<compile_context>
chip_gen: v7x
topology: tpu7x:2x2x1
jax: 0.10.0
libtpu: 0.0.40
codegen_flags: <defaults>
</compile_context>

<pallas_src>
import jax
import jax.numpy as jnp
from jax import lax
from jax.experimental import pallas as pl
from jax.experimental.pallas import tpu as pltpu


def _round_up(x, m):
    return ((x + m - 1) // m) * m


def _make_kernel(n_rows, n_real_p, n_fake_p, real_label, block_rows):
    inv_n = 1.0 / float(n_rows)
    inv_rp = 1.0 / float(n_real_p)
    inv_fp = 1.0 / float(n_fake_p)

    def kernel(real_p_ref, fake_p_ref, real_cp_ref, fake_cp_ref, labels_ref, out_ref):
        pid = pl.program_id(0)

        # Lane-dense scatter masks for the (8, 128) per-tile partial-sum block.
        sub = lax.broadcasted_iota(jnp.int32, (8, 128), 0)
        lane = lax.broadcasted_iota(jnp.int32, (8, 128), 1)
        scatter_ce = (sub == 0) & (lane == 0)
        scatter_bce = (sub == 0) & (lane == 1)

        # ---- per-tile cross-entropy partial sums (both class-logit streams) ----
        real_cp = real_cp_ref[...].astype(jnp.float32)    # (TN, C)
        fake_cp = fake_cp_ref[...].astype(jnp.float32)    # (TN, C)
        labels = labels_ref[...]                          # (TN, 1) int32
        tn, c = real_cp.shape

        row_ids = pid * block_rows + lax.broadcasted_iota(jnp.int32, (tn, 1), 0)
        row_valid = row_ids < n_rows                      # masks padded tail rows

        # Hoisted one-hot: shared by both CE terms (same labels, same shape).
        class_ids = lax.broadcasted_iota(jnp.int32, (tn, c), 1)
        onehot = class_ids == labels                      # (TN, C) bool

        def ce_sum(logits):
            # All intermediates stay 2-D / (TN, 1)-shaped (layout-friendly).
            m = jnp.max(logits, axis=-1, keepdims=True)                               # (TN, 1)
            lse = m + jnp.log(jnp.sum(jnp.exp(logits - m), axis=-1, keepdims=True))   # (TN, 1)
            picked = jnp.sum(jnp.where(onehot, logits, 0.0), axis=-1, keepdims=True)  # (TN, 1)
            per_row = jnp.where(row_valid, lse - picked, 0.0)
            return jnp.sum(per_row, keepdims=True)                                    # (1, 1)

        # NOTE: real_c_loss uses fake_cp and fake_c_loss uses real_cp (as in torch).
        ce_partial = (ce_sum(fake_cp) + ce_sum(real_cp)) * jnp.float32(inv_n)          # (1, 1)
        out_ref[...] = jnp.where(scatter_ce, ce_partial, jnp.float32(0.0))

        # ---- adversarial BCE terms: lane-dense packed, computed once ----
        @pl.when(pid == 0)
        def _():
            def bce_mean(ref, target, n_valid, inv):
                x = ref[...].astype(jnp.float32)                       # (R, 128)
                flat = (lax.broadcasted_iota(jnp.int32, x.shape, 0) * 128
                        + lax.broadcasted_iota(jnp.int32, x.shape, 1))
                # Numerically-stable BCE with logits (torch formulation).
                v = (jnp.maximum(x, 0.0) - x * jnp.float32(target)
                     + jnp.log1p(jnp.exp(-jnp.abs(x))))
                v = jnp.where(flat < n_valid, v, 0.0)                  # mask padded tail
                return jnp.sum(v, keepdims=True) * jnp.float32(inv)    # (1, 1)

            bce = (bce_mean(real_p_ref, real_label, n_real_p, inv_rp)
                   + bce_mean(fake_p_ref, 0.0, n_fake_p, inv_fp))
            out_ref[...] = jnp.where(scatter_bce, bce, out_ref[...])

    return kernel


def _pack_lane_dense(x):
    """Flatten to (R, 128) lane-dense (zero-padded); R is a multiple of 8."""
    flat = x.reshape(-1)
    rows = max(8, _round_up(-(-flat.size // 128), 8))
    total = rows * 128
    if total != flat.size:
        flat = jnp.pad(flat, (0, total - flat.size))
    return flat.reshape(rows, 128)


def ac_discriminator_loss(real_p, fake_p, real_cp, fake_cp, labels, real_label=1.0):
    n, c = real_cp.shape
    n_rp = real_p.size
    n_fp = fake_p.size

    # Keep native dtype for all logit streams; cast happens inside the kernel.
    rp = _pack_lane_dense(real_p)
    fp = _pack_lane_dense(fake_p)
    lbl = labels.reshape(-1, 1).astype(jnp.int32)

    # Tile rows: 2 streams x 2 pipeline buffers x (TN, C) <= ~8 MiB
    # (fits v5e's 16 MiB default scoped VMEM; comfortable on v6e/v7x).
    itemsize = jnp.dtype(real_cp.dtype).itemsize
    budget_bytes = 8 * 1024 * 1024
    tn = budget_bytes // (4 * c * itemsize)
    tn = max(8, min(2048, (tn // 8) * 8))
    tn = min(tn, _round_up(n, 8))
    n_tiles = -(-n // tn)  # cdiv; last (partial) tile is masked in-kernel

    kernel = _make_kernel(n, n_rp, n_fp, float(real_label), tn)
    partials = pl.pallas_call(
        kernel,
        out_shape=jax.ShapeDtypeStruct((n_tiles * 8, 128), jnp.float32),
        grid=(n_tiles,),
        in_specs=[
            pl.BlockSpec(rp.shape, lambda i: (0, 0)),    # resident; read on pid==0
            pl.BlockSpec(fp.shape, lambda i: (0, 0)),    # resident; read on pid==0
            pl.BlockSpec((tn, c), lambda i: (i, 0)),     # real_cp tiles (pipelined)
            pl.BlockSpec((tn, c), lambda i: (i, 0)),     # fake_cp tiles (pipelined)
            pl.BlockSpec((tn, 1), lambda i: (i, 0)),     # labels tiles
        ],
        out_specs=pl.BlockSpec((8, 128), lambda i: (i, 0)),
        compiler_params=pltpu.CompilerParams(
            dimension_semantics=("parallel",)),
    )(rp, fp, real_cp, fake_cp, lbl)

    # Tiny exact finish: every non-scattered element is exactly 0.0.
    return jnp.sum(partials)


if __name__ == "__main__":
    def reference(real_p, fake_p, real_cp, fake_cp, labels, real_label=1.0):
        rp = real_p.astype(jnp.float32)
        fp = fake_p.astype(jnp.float32)
        rcp = real_cp.astype(jnp.float32)
        fcp = fake_cp.astype(jnp.float32)

        def bce(x, y):
            return jnp.mean(jnp.maximum(x, 0.0) - x * y + jnp.log1p(jnp.exp(-jnp.abs(x))))

        def ce(logits, lab):
            lse = jax.nn.logsumexp(logits, axis=-1)
            picked = jnp.take_along_axis(logits, lab[:, None], axis=-1)[:, 0]
            return jnp.mean(lse - picked)

        return (bce(rp, float(real_label)) + bce(fp, 0.0)
                + ce(fcp, labels) + ce(rcp, labels))

    key = jax.random.PRNGKey(0)

    # Case 1: f32, batch divisible by the tile.
    k1, k2, k3, k4, k5, key = jax.random.split(key, 6)
    N, C = 8, 10
    real_p = jax.random.normal(k1, (N, 1), dtype=jnp.float32)
    fake_p = jax.random.normal(k2, (N, 1), dtype=jnp.float32)
    real_cp = jax.random.normal(k3, (N, C), dtype=jnp.float32)
    fake_cp = jax.random.normal(k4, (N, C), dtype=jnp.float32)
    labels = jax.random.randint(k5, (N,), 0, C, dtype=jnp.int32)

    loss = ac_discriminator_loss(real_p, fake_p, real_cp, fake_cp, labels, real_label=1.0)
    jax.block_until_ready(loss)
    ref = reference(real_p, fake_p, real_cp, fake_cp, labels, real_label=1.0)
    assert jnp.allclose(loss, ref, rtol=1e-5, atol=1e-5), (loss, ref)

    # Case 2: bf16 logits, batch NOT divisible by the tile (exercises the
    # tail masking and the native-dtype DMA + in-kernel cast path).
    k1, k2, k3, k4, k5, key = jax.random.split(key, 6)
    N2, C2 = 13, 37
    real_p2 = jax.random.normal(k1, (N2, 1), dtype=jnp.bfloat16)
    fake_p2 = jax.random.normal(k2, (N2, 1), dtype=jnp.bfloat16)
    real_cp2 = jax.random.normal(k3, (N2, C2), dtype=jnp.bfloat16)
    fake_cp2 = jax.random.normal(k4, (N2, C2), dtype=jnp.bfloat16)
    labels2 = jax.random.randint(k5, (N2,), 0, C2, dtype=jnp.int32)

    loss2 = ac_discriminator_loss(real_p2, fake_p2, real_cp2, fake_cp2, labels2, real_label=1.0)
    jax.block_until_ready(loss2)
    ref2 = reference(real_p2, fake_p2, real_cp2, fake_cp2, labels2, real_label=1.0)
    assert jnp.allclose(loss2, ref2, rtol=1e-4, atol=1e-4), (loss2, ref2)

    print("KERNEL_OK")
</pallas_src>

<mosaic_0001>
module attributes {stable_mosaic.version = 11 : i64} {
  func.func @kernel(%arg0: i32, %arg1: memref<8x128xf32, #tpu.memory_space<vmem>>, %arg2: memref<8x128xf32, #tpu.memory_space<vmem>>, %arg3: memref<8x10xf32, #tpu.memory_space<vmem>>, %arg4: memref<8x10xf32, #tpu.memory_space<vmem>>, %arg5: memref<8x1xi32, #tpu.memory_space<vmem>>, %arg6: memref<8x128xf32, #tpu.memory_space<vmem>>) attributes {dimension_semantics = [#tpu.dimension_semantics<parallel>], iteration_bounds = array<i64: 1>, scalar_prefetch = 0 : i64, scratch_operands = 0 : i64, tpu.core_type = #tpu.core_type<tc>, window_params = [{pipeline_mode = #tpu.pipeline_mode<synchronous>, transform_indices = @transform_0, window_bounds = array<i64: 8, 128>}, {pipeline_mode = #tpu.pipeline_mode<synchronous>, transform_indices = @transform_1, window_bounds = array<i64: 8, 128>}, {transform_indices = @transform_2, window_bounds = array<i64: 8, 10>}, {transform_indices = @transform_3, window_bounds = array<i64: 8, 10>}, {transform_indices = @transform_4, window_bounds = array<i64: 8, 1>}, {transform_indices = @transform_5, window_bounds = array<i64: 8, 128>}]} {
    %0 = tpu.iota {dimensions = array<i32: 0>} : vector<8x128xi32>
    %1 = tpu.iota {dimensions = array<i32: 1>} : vector<8x128xi32>
    %c0_i32 = arith.constant 0 : i32
    %2 = vector.broadcast %c0_i32 : i32 to vector<8x128xi32>
    %3 = arith.cmpi eq, %0, %2 : vector<8x128xi32>
    %c0_i32_0 = arith.constant 0 : i32
    %4 = vector.broadcast %c0_i32_0 : i32 to vector<8x128xi32>
    %5 = arith.cmpi eq, %1, %4 : vector<8x128xi32>
    %6 = arith.andi %3, %5 : vector<8x128xi1>
    %c0_i32_1 = arith.constant 0 : i32
    %7 = vector.broadcast %c0_i32_1 : i32 to vector<8x128xi32>
    %8 = arith.cmpi eq, %0, %7 : vector<8x128xi32>
    %c1_i32 = arith.constant 1 : i32
    %9 = vector.broadcast %c1_i32 : i32 to vector<8x128xi32>
    %10 = arith.cmpi eq, %1, %9 : vector<8x128xi32>
    %11 = arith.andi %8, %10 : vector<8x128xi1>
    %c0 = arith.constant 0 : index
    %c0_2 = arith.constant 0 : index
    %12 = vector.load %arg3[%c0, %c0_2] : memref<8x10xf32, #tpu.memory_space<vmem>>, vector<8x10xf32>
    %c0_3 = arith.constant 0 : index
    %c0_4 = arith.constant 0 : index
    %13 = vector.load %arg4[%c0_3, %c0_4] : memref<8x10xf32, #tpu.memory_space<vmem>>, vector<8x10xf32>
    %c0_5 = arith.constant 0 : index
    %c0_6 = arith.constant 0 : index
    %14 = vector.load %arg5[%c0_5, %c0_6] : memref<8x1xi32, #tpu.memory_space<vmem>>, vector<8x1xi32>
    %c8_i32 = arith.constant 8 : i32
    %15 = arith.muli %arg0, %c8_i32 : i32
    %16 = tpu.iota {dimensions = array<i32: 0>} : vector<8x1xi32>
    %17 = vector.broadcast %15 : i32 to vector<8x1xi32>
    %18 = arith.addi %17, %16 : vector<8x1xi32>
    %c8_i32_7 = arith.constant 8 : i32
    %19 = vector.broadcast %c8_i32_7 : i32 to vector<8x1xi32>
    %20 = arith.cmpi slt, %18, %19 : vector<8x1xi32>
    %21 = tpu.iota {dimensions = array<i32: 1>} : vector<8x10xi32>
    %22 = vector.broadcast %14 : vector<8x1xi32> to vector<8x10xi32>
    %23 = arith.cmpi eq, %21, %22 : vector<8x10xi32>
    %cst = arith.constant dense<0xFF800000> : vector<8xf32>
    %24 = vector.multi_reduction <maximumf>, %13, %cst [1] : vector<8x10xf32> to vector<8xf32>
    %25 = vector.shape_cast %24 : vector<8xf32> to vector<8x1xf32>
    %26 = vector.broadcast %25 : vector<8x1xf32> to vector<8x10xf32>
    %27 = arith.subf %13, %26 : vector<8x10xf32>
    %28 = math.exp %27 : vector<8x10xf32>
    %cst_8 = arith.constant dense<0.000000e+00> : vector<8xf32>
    %29 = vector.multi_reduction <add>, %28, %cst_8 [1] : vector<8x10xf32> to vector<8xf32>
    %30 = vector.shape_cast %29 : vector<8xf32> to vector<8x1xf32>
    %31 = math.log %30 : vector<8x1xf32>
    %32 = arith.addf %25, %31 : vector<8x1xf32>
    %cst_9 = arith.constant 0.000000e+00 : f32
    %33 = vector.broadcast %cst_9 : f32 to vector<8x10xf32>
    %34 = arith.select %23, %13, %33 : vector<8x10xi1>, vector<8x10xf32>
    %cst_10 = arith.constant dense<0.000000e+00> : vector<8xf32>
    %35 = vector.multi_reduction <add>, %34, %cst_10 [1] : vector<8x10xf32> to vector<8xf32>
    %36 = vector.shape_cast %35 : vector<8xf32> to vector<8x1xf32>
    %37 = arith.subf %32, %36 : vector<8x1xf32>
    %cst_11 = arith.constant 0.000000e+00 : f32
    %38 = vector.broadcast %cst_11 : f32 to vector<8x1xf32>
    %39 = arith.select %20, %37, %38 : vector<8x1xi1>, vector<8x1xf32>
    %40 = vector.shape_cast %39 : vector<8x1xf32> to vector<1x8x1xf32>
    %cst_12 = arith.constant dense<0.000000e+00> : vector<1xf32>
    %41 = vector.multi_reduction <add>, %40, %cst_12 [1, 2] : vector<1x8x1xf32> to vector<1xf32>
    %42 = vector.shape_cast %41 : vector<1xf32> to vector<1x1x1xf32>
    %43 = vector.extract %42[0, 0, 0] : f32 from vector<1x1x1xf32>
    %44 = vector.broadcast %43 : f32 to vector<1x1xf32>
    %cst_13 = arith.constant dense<0xFF800000> : vector<8xf32>
    %45 = vector.multi_reduction <maximumf>, %12, %cst_13 [1] : vector<8x10xf32> to vector<8xf32>
    %46 = vector.shape_cast %45 : vector<8xf32> to vector<8x1xf32>
    %47 = vector.broadcast %46 : vector<8x1xf32> to vector<8x10xf32>
    %48 = arith.subf %12, %47 : vector<8x10xf32>
    %49 = math.exp %48 : vector<8x10xf32>
    %cst_14 = arith.constant dense<0.000000e+00> : vector<8xf32>
    %50 = vector.multi_reduction <add>, %49, %cst_14 [1] : vector<8x10xf32> to vector<8xf32>
    %51 = vector.shape_cast %50 : vector<8xf32> to vector<8x1xf32>
    %52 = math.log %51 : vector<8x1xf32>
    %53 = arith.addf %46, %52 : vector<8x1xf32>
    %cst_15 = arith.constant 0.000000e+00 : f32
    %54 = vector.broadcast %cst_15 : f32 to vector<8x10xf32>
    %55 = arith.select %23, %12, %54 : vector<8x10xi1>, vector<8x10xf32>
    %cst_16 = arith.constant dense<0.000000e+00> : vector<8xf32>
    %56 = vector.multi_reduction <add>, %55, %cst_16 [1] : vector<8x10xf32> to vector<8xf32>
    %57 = vector.shape_cast %56 : vector<8xf32> to vector<8x1xf32>
    %58 = arith.subf %53, %57 : vector<8x1xf32>
    %cst_17 = arith.constant 0.000000e+00 : f32
    %59 = vector.broadcast %cst_17 : f32 to vector<8x1xf32>
    %60 = arith.select %20, %58, %59 : vector<8x1xi1>, vector<8x1xf32>
    %61 = vector.shape_cast %60 : vector<8x1xf32> to vector<1x8x1xf32>
    %cst_18 = arith.constant dense<0.000000e+00> : vector<1xf32>
    %62 = vector.multi_reduction <add>, %61, %cst_18 [1, 2] : vector<1x8x1xf32> to vector<1xf32>
    %63 = vector.shape_cast %62 : vector<1xf32> to vector<1x1x1xf32>
    %64 = vector.extract %63[0, 0, 0] : f32 from vector<1x1x1xf32>
    %65 = vector.broadcast %64 : f32 to vector<1x1xf32>
    %66 = arith.addf %44, %65 : vector<1x1xf32>
    %cst_19 = arith.constant 1.250000e-01 : f32
    %67 = vector.broadcast %cst_19 : f32 to vector<1x1xf32>
    %68 = arith.mulf %66, %67 : vector<1x1xf32>
    %cst_20 = arith.constant 0.000000e+00 : f32
    %69 = vector.shape_cast %68 : vector<1x1xf32> to vector<1x1xf32>
    %70 = vector.broadcast %69 : vector<1x1xf32> to vector<8x128xf32>
    %71 = vector.broadcast %cst_20 : f32 to vector<8x128xf32>
    %72 = arith.select %6, %70, %71 : vector<8x128xi1>, vector<8x128xf32>
    %c0_21 = arith.constant 0 : index
    %c0_22 = arith.constant 0 : index
    %73 = vector.load %arg6[%c0_21, %c0_22] : memref<8x128xf32, #tpu.memory_space<vmem>>, vector<8x128xf32>
    tpu.vector_store %arg6[%c0_21, %c0_22], %72 {strides = array<i32>} : memref<8x128xf32, #tpu.memory_space<vmem>>, vector<8x128xf32>,
    %c0_i32_23 = arith.constant 0 : i32
    %74 = arith.cmpi eq, %arg0, %c0_i32_23 : i32
    %75 = arith.extui %74 : i1 to i32
    %c0_i32_24 = arith.constant 0 : i32
    %76 = arith.cmpi ne, %75, %c0_i32_24 : i32
    scf.if %76 {
      %c0_25 = arith.constant 0 : index
      %c0_26 = arith.constant 0 : index
      %77 = vector.load %arg1[%c0_25, %c0_26] : memref<8x128xf32, #tpu.memory_space<vmem>>, vector<8x128xf32>
      %78 = tpu.iota {dimensions = array<i32: 0>} : vector<8x128xi32>
      %c128_i32 = arith.constant 128 : i32
      %79 = vector.broadcast %c128_i32 : i32 to vector<8x128xi32>
      %80 = arith.muli %78, %79 : vector<8x128xi32>
      %81 = tpu.iota {dimensions = array<i32: 1>} : vector<8x128xi32>
      %82 = arith.addi %80, %81 : vector<8x128xi32>
      %cst_27 = arith.constant 0.000000e+00 : f32
      %83 = vector.broadcast %cst_27 : f32 to vector<8x128xf32>
      %84 = arith.maximumf %77, %83 : vector<8x128xf32>
      %cst_28 = arith.constant 1.000000e+00 : f32
      %85 = vector.broadcast %cst_28 : f32 to vector<8x128xf32>
      %86 = arith.mulf %77, %85 : vector<8x128xf32>
      %87 = arith.subf %84, %86 : vector<8x128xf32>
      %88 = math.absf %77 : vector<8x128xf32>
      %cst_29 = arith.constant 0.000000e+00 : f32
      %89 = vector.broadcast %cst_29 : f32 to vector<8x128xf32>
      %90 = arith.subf %89, %88 : vector<8x128xf32>
      %91 = math.exp %90 : vector<8x128xf32>
      %92 = math.log1p %91 : vector<8x128xf32>
      %93 = arith.addf %87, %92 : vector<8x128xf32>
      %c8_i32_30 = arith.constant 8 : i32
      %94 = vector.broadcast %c8_i32_30 : i32 to vector<8x128xi32>
      %95 = arith.cmpi slt, %82, %94 : vector<8x128xi32>
      %cst_31 = arith.constant 0.000000e+00 : f32
      %96 = vector.broadcast %cst_31 : f32 to vector<8x128xf32>
      %97 = arith.select %95, %93, %96 : vector<8x128xi1>, vector<8x128xf32>
      %98 = vector.shape_cast %97 : vector<8x128xf32> to vector<1x8x128xf32>
      %cst_32 = arith.constant dense<0.000000e+00> : vector<1xf32>
      %99 = vector.multi_reduction <add>, %98, %cst_32 [1, 2] : vector<1x8x128xf32> to vector<1xf32>
      %100 = vector.shape_cast %99 : vector<1xf32> to vector<1x1x1xf32>
      %101 = vector.extract %100[0, 0, 0] : f32 from vector<1x1x1xf32>
      %102 = vector.broadcast %101 : f32 to vector<1x1xf32>
      %cst_33 = arith.constant 1.250000e-01 : f32
      %103 = vector.broadcast %cst_33 : f32 to vector<1x1xf32>
      %104 = arith.mulf %102, %103 : vector<1x1xf32>
      %c0_34 = arith.constant 0 : index
      %c0_35 = arith.constant 0 : index
      %105 = vector.load %arg2[%c0_34, %c0_35] : memref<8x128xf32, #tpu.memory_space<vmem>>, vector<8x128xf32>
      %106 = tpu.iota {dimensions = array<i32: 0>} : vector<8x128xi32>
      %c128_i32_36 = arith.constant 128 : i32
      %107 = vector.broadcast %c128_i32_36 : i32 to vector<8x128xi32>
      %108 = arith.muli %106, %107 : vector<8x128xi32>
      %109 = tpu.iota {dimensions = array<i32: 1>} : vector<8x128xi32>
      %110 = arith.addi %108, %109 : vector<8x128xi32>
      %cst_37 = arith.constant 0.000000e+00 : f32
      %111 = vector.broadcast %cst_37 : f32 to vector<8x128xf32>
      %112 = arith.maximumf %105, %111 : vector<8x128xf32>
      %cst_38 = arith.constant 0.000000e+00 : f32
      %113 = vector.broadcast %cst_38 : f32 to vector<8x128xf32>
      %114 = arith.mulf %105, %113 : vector<8x128xf32>
      %115 = arith.subf %112, %114 : vector<8x128xf32>
      %116 = math.absf %105 : vector<8x128xf32>
      %cst_39 = arith.constant 0.000000e+00 : f32
      %117 = vector.broadcast %cst_39 : f32 to vector<8x128xf32>
      %118 = arith.subf %117, %116 : vector<8x128xf32>
      %119 = math.exp %118 : vector<8x128xf32>
      %120 = math.log1p %119 : vector<8x128xf32>
      %121 = arith.addf %115, %120 : vector<8x128xf32>
      %c8_i32_40 = arith.constant 8 : i32
      %122 = vector.broadcast %c8_i32_40 : i32 to vector<8x128xi32>
      %123 = arith.cmpi slt, %110, %122 : vector<8x128xi32>
      %cst_41 = arith.constant 0.000000e+00 : f32
      %124 = vector.broadcast %cst_41 : f32 to vector<8x128xf32>
      %125 = arith.select %123, %121, %124 : vector<8x128xi1>, vector<8x128xf32>
      %126 = vector.shape_cast %125 : vector<8x128xf32> to vector<1x8x128xf32>
      %cst_42 = arith.constant dense<0.000000e+00> : vector<1xf32>
      %127 = vector.multi_reduction <add>, %126, %cst_42 [1, 2] : vector<1x8x128xf32> to vector<1xf32>
      %128 = vector.shape_cast %127 : vector<1xf32> to vector<1x1x1xf32>
      %129 = vector.extract %128[0, 0, 0] : f32 from vector<1x1x1xf32>
      %130 = vector.broadcast %129 : f32 to vector<1x1xf32>
      %cst_43 = arith.constant 1.250000e-01 : f32
      %131 = vector.broadcast %cst_43 : f32 to vector<1x1xf32>
      %132 = arith.mulf %130, %131 : vector<1x1xf32>
      %133 = arith.addf %104, %132 : vector<1x1xf32>
      %c0_44 = arith.constant 0 : index
      %c0_45 = arith.constant 0 : index
      %134 = vector.load %arg6[%c0_44, %c0_45] : memref<8x128xf32, #tpu.memory_space<vmem>>, vector<8x128xf32>
      %135 = vector.shape_cast %133 : vector<1x1xf32> to vector<1x1xf32>
      %136 = vector.broadcast %135 : vector<1x1xf32> to vector<8x128xf32>
      %137 = arith.select %11, %136, %134 : vector<8x128xi1>, vector<8x128xf32>
      %c0_46 = arith.constant 0 : index
      %c0_47 = arith.constant 0 : index
      %138 = vector.load %arg6[%c0_46, %c0_47] : memref<8x128xf32, #tpu.memory_space<vmem>>, vector<8x128xf32>
      tpu.vector_store %arg6[%c0_46, %c0_47], %137 {strides = array<i32>} : memref<8x128xf32, #tpu.memory_space<vmem>>, vector<8x128xf32>,
    } else {
    }
    return
  }
  func.func @transform_0(%arg0: i32) -> (i32, i32) {
    %c0_i32 = arith.constant 0 : i32
    %c0_i32_0 = arith.constant 0 : i32
    %c0_i32_1 = arith.constant 0 : i32
    return %c0_i32, %c0_i32_0 : i32, i32
  }
  func.func @transform_1(%arg0: i32) -> (i32, i32) {
    %c0_i32 = arith.constant 0 : i32
    %c0_i32_0 = arith.constant 0 : i32
    %c0_i32_1 = arith.constant 0 : i32
    return %c0_i32, %c0_i32_0 : i32, i32
  }
  func.func @transform_2(%arg0: i32) -> (i32, i32) {
    %c0_i32 = arith.constant 0 : i32
    %c0_i32_0 = arith.constant 0 : i32
    return %arg0, %c0_i32 : i32, i32
  }
  func.func @transform_3(%arg0: i32) -> (i32, i32) {
    %c0_i32 = arith.constant 0 : i32
    %c0_i32_0 = arith.constant 0 : i32
    return %arg0, %c0_i32 : i32, i32
  }
  func.func @transform_4(%arg0: i32) -> (i32, i32) {
    %c0_i32 = arith.constant 0 : i32
    %c0_i32_0 = arith.constant 0 : i32
    return %arg0, %c0_i32 : i32, i32
  }
  func.func @transform_5(%arg0: i32) -> (i32, i32) {
    %c0_i32 = arith.constant 0 : i32
    %c0_i32_0 = arith.constant 0 : i32
    return %arg0, %c0_i32 : i32, i32
  }
}

</mosaic_0001>

<llo_original>
// kernel: tpu_custom_call.1
$region0: #{tpu_custom_call.1}
  #allocation0 [shape = 'u32[]', space=smem, size = 0x4, offset = 0x4, fixed_abs, tag = 'smem constant byte address 0x4 - core index']
  #allocation1 [shape = 'u32[144,128]{1,0:T(1,128)}', space=vmem, size = 0x12000, scoped, tag = 'internal scratch']
  %s0 = inlined_call_operand.vmem [shape: f32[8,128], index: 0, kind: input, shape index: {}]
  %s1 = inlined_call_operand.hbm [shape: f32[8,128], index: 1, kind: input, shape index: {}]
  %s2 = inlined_call_operand.vmem [shape: f32[8,10], index: 2, kind: input, shape index: {}]
  %s3 = inlined_call_operand.hbm [shape: f32[8,10], index: 3, kind: input, shape index: {}]
  %s4 = inlined_call_operand.vmem [shape: s32[8,1], index: 4, kind: input, shape index: {}]
  %s5 = inlined_call_operand.hbm [shape: f32[8,128], index: 5, kind: output, shape index: {}]
  %s6 = sld [smem:[#allocation0]]
  $region42: #{tpu_custom_call.1} parent=0
    _
  %s8 = ssub.s32 1, %s6
  %s9 = scalar_select 0, %s8, %s6
  $region1: #{tpu_custom_call.1} parent=0
    #allocation2 [shape = 'u8[4096]{0}', space=vmem, size = 0x1000, scoped, tag = 'input window, operand 1, single buffered']
    #allocation3 [shape = 's32[1]{0}', space=sflag, size = 0x4, scoped, tag = 'scoped memory for tpu_custom_call.1']
    #allocation4 [shape = 's32[1]{0}', space=sflag, size = 0x4, scoped, tag = 'scoped memory for tpu_custom_call.1']
    #allocation5 [shape = 'u8[4096]{0}', space=vmem, size = 0x1000, scoped, tag = 'input window, operand 3, single buffered']
    #allocation6 [shape = 's32[1]{0}', space=sflag, size = 0x4, scoped, tag = 'scoped memory for tpu_custom_call.1']
    #allocation7 [shape = 'u8[4096]{0}', space=vmem, size = 0x1000, scoped, tag = 'output window, operand 0, single buffered']
    %10 = vsyncpa [#allocation3], 0
    %11 = vsyncpa [#allocation6], 0
    %12 = vsyncpa [#allocation4], 0
    // Predicated region
    $region2: #{tpu_custom_call.1} parent=1 // pred_check
      _
    $region3: #{tpu_custom_call.1} parent=1 // pred_check_branch
      %14 = sbr.rel (0) target = $region5
    $region4: #{tpu_custom_call.1} parent=1 // pred_region
      _
    $region5: #{tpu_custom_call.1} parent=1 // pred_fallthru
      _
    // Predicated region
    $region6: #{tpu_custom_call.1} parent=1 // pred_check
      _
    $region7: #{tpu_custom_call.1} parent=1 // pred_check_branch
      %16 = sbr.rel (0) target = $region9
    $region8: #{tpu_custom_call.1} parent=1 // pred_region
      %s18 = ssub.s32 128, 128
      %19 = vsyncadd [#allocation3], %s18
      %s21 = sshll.u32 [#allocation2], 4
      %s22 = int_to_ptr.vmem [resolvable:$true] %s21
      %24 = dma.hbm_to_vmem [thread:$0]  %s1, 128, %s22, [#allocation3]
    $region9: #{tpu_custom_call.1} parent=1 // pred_fallthru
      _
    // Predicated region
    $region10: #{tpu_custom_call.1} parent=1 // pred_check
      _
    $region11: #{tpu_custom_call.1} parent=1 // pred_check_branch
      %26 = sbr.rel (0) target = $region13
    $region12: #{tpu_custom_call.1} parent=1 // pred_region
      _
    $region13: #{tpu_custom_call.1} parent=1 // pred_fallthru
      _
    // Predicated region
    $region14: #{tpu_custom_call.1} parent=1 // pred_check
      _
    $region15: #{tpu_custom_call.1} parent=1 // pred_check_branch
      %28 = sbr.rel (0) target = $region17
    $region16: #{tpu_custom_call.1} parent=1 // pred_region
      %s30 = ssub.s32 128, 128
      %31 = vsyncadd [#allocation6], %s30
      %s33 = sshll.u32 [#allocation5], 4
      %s34 = int_to_ptr.vmem [resolvable:$true] %s33
      %36 = dma.hbm_to_vmem [thread:$0]  %s3, 128, %s34, [#allocation6]
    $region17: #{tpu_custom_call.1} parent=1 // pred_fallthru
      _
    // Predicated region
    $region18: #{tpu_custom_call.1} parent=1 // pred_check
      _
    $region19: #{tpu_custom_call.1} parent=1 // pred_check_branch
      %38 = sbr.rel (0) target = $region21
    $region20: #{tpu_custom_call.1} parent=1 // pred_region
      _
    $region21: #{tpu_custom_call.1} parent=1 // pred_fallthru
      _
    // Predicated region
    $region22: #{tpu_custom_call.1} parent=1 // pred_check
      _
    $region23: #{tpu_custom_call.1} parent=1 // pred_check_branch
      %40 = sbr.rel (0) target = $region25
    $region24: #{tpu_custom_call.1} parent=1 // pred_region
      %41 = dma.done [#allocation3], 128
    $region25: #{tpu_custom_call.1} parent=1 // pred_fallthru
      _
    // Predicated region
    $region26: #{tpu_custom_call.1} parent=1 // pred_check
      _
    $region27: #{tpu_custom_call.1} parent=1 // pred_check_branch
      %43 = sbr.rel (0) target = $region29
    $region28: #{tpu_custom_call.1} parent=1 // pred_region
      %44 = dma.done [#allocation6], 128
    $region29: #{tpu_custom_call.1} parent=1 // pred_fallthru
      _
    %v45 = vlaneseq
    %v46 = vshrl.u32 %v45, 7
    %v47 = vlaneseq
    %v48 = vand.u32 %v47, 127
    %vm49 = vcmp.eq.s32.totalorder %v46, 0
    %vm50 = vcmp.eq.s32.totalorder %v48, 0
    %vm51 = vmand %vm49, %vm50
    %vm52 = vcmp.eq.s32.totalorder %v48, 1
    %vm53 = vmand %vm49, %vm52
    %v54 = vld [vmem:[%s2] sm:$0xff]
    %v55 = vld [vmem:[#allocation5] sm:$0xff]
    %v56 = vld [vmem:[%s4] sm:$0xff]
    %s57 = smul.u32 0, 8
    %v58 = vstv %s57
    %v59 = vadd.s32 %v58, %v46
    %vm60 = vcmp.lt.s32.totalorder %v59, 8
    %61 = vset.pattern.permute.xlu0 0
    %62 = vperm.xlu0 %61, %v56
    %v63 = vpop.permute.xlu0 %62
    %vm64 = vcmp.eq.s32.totalorder %v48, %v63
    %vm65 = vcmask 80896
    %v66 = vsel %vm65, %v55, -inf
    %67 = vmax.xlane.f32.xlu0 %v66
    %v68 = vpop.xlane.xlu0 %67
    %v69 = vsub.f32 %v55, %v68
    %v70 = vmul.f32 %v69, 1.442695
    %v71 = vpow.pop %v70
    %v72 = vsel %vm65, %v71, 0.0
    %73 = vadd.xlane.f32.xlu0 %v72
    %v74 = vpop.xlane.xlu0 %73
    %v75 = vlog2.pop %v74
    %v76 = vmul.f32 %v75, 0.6931472
    %v77 = vadd.f32 %v68, %v76
    %v78 = vsel %vm64, %v55, 0.0
    %v79 = vsel %vm65, %v78, 0.0
    %80 = vadd.xlane.f32.xlu0 %v79
    %v81 = vpop.xlane.xlu0 %80
    %v82 = vsub.f32 %v77, %v81
    %v83 = vsel %vm60, %v82, 0.0
    %vm84 = vcmask 7168
    %v85 = vsel %vm84, %v83, 0.0
    %86 = vadd.xlane.f32.xlu0 %v85
    %v87 = vpop.xlane.xlu0 %86
    %v88 = vrot.slane %v87, 4
    %v89 = vadd.f32 %v87, %v88
    %v90 = vrot.slane %v89, 2
    %v91 = vadd.f32 %v89, %v90
    %v92 = vrot.slane %v91, 1
    %v93 = vadd.f32 %v91, %v92
    %s94 = vtos %v93
    %v95 = vstv %s94
    %v96 = vsel %vm65, %v54, -inf
    %97 = vmax.xlane.f32.xlu0 %v96
    %v98 = vpop.xlane.xlu0 %97
    %v99 = vsub.f32 %v54, %v98
    %v100 = vmul.f32 %v99, 1.442695
    %v101 = vpow.pop %v100
    %v102 = vsel %vm65, %v101, 0.0
    %103 = vadd.xlane.f32.xlu0 %v102
    %v104 = vpop.xlane.xlu0 %103
    %v105 = vlog2.pop %v104
    %v106 = vmul.f32 %v105, 0.6931472
    %v107 = vadd.f32 %v98, %v106
    %v108 = vsel %vm64, %v54, 0.0
    %v109 = vsel %vm65, %v108, 0.0
    %110 = vadd.xlane.f32.xlu0 %v109
    %v111 = vpop.xlane.xlu0 %110
    %v112 = vsub.f32 %v107, %v111
    %v113 = vsel %vm60, %v112, 0.0
    %v114 = vsel %vm84, %v113, 0.0
    %115 = vadd.xlane.f32.xlu0 %v114
    %v116 = vpop.xlane.xlu0 %115
    %v117 = vrot.slane %v116, 4
    %v118 = vadd.f32 %v116, %v117
    %v119 = vrot.slane %v118, 2
    %v120 = vadd.f32 %v118, %v119
    %v121 = vrot.slane %v120, 1
    %v122 = vadd.f32 %v120, %v121
    %s123 = vtos %v122
    %v124 = vstv %s123
    %v125 = vadd.f32 %v95, %v124
    %v126 = vmul.f32 %v125, 0.125
    %v127 = vsel %vm51, %v126, 0.0
    %128 = vst [vmem:[#allocation7] sm:$0xff] %v127
    %p129 = scmp.eq.s32.totalorder 0, 0
    // Predicated region
    $region30: #{tpu_custom_call.1} parent=1 // pred_check
      %p130 = pneg %p129
    $region31: #{tpu_custom_call.1} parent=1 // pred_check_branch
      %132 = sbr.rel (%p130) target = $region33
    $region32: #{tpu_custom_call.1} parent=1 // pred_region
      %v133 = vld [vmem:[%s0] sm:$0xff]
      %v134 = vmul.u32 %v46, 128
      %v135 = vadd.s32 %v134, %v48
      %v136 = vmax.f32 %v133, 0.0
      %v137 = vsub.f32 %v136, %v133
      %v138 = vand.u32 2147483647, %v133
      %v139 = vsub.f32 0.0, %v138
      %v140 = vmul.f32 %v139, 1.442695
      %v141 = vpow.pop %v140
      %v142 = vadd.f32 %v141, 1.0
      %v143 = vlog2.pop %v142
      %v144 = vmul.f32 %v143, 0.6931472
      %v145 = vmul.f32 -0.5, %v141
      %v146 = vadd.f32 %v145, 1.0
      %v147 = vmul.f32 %v146, %v141
      %v148 = vand.u32 2147483647, %v141
      %vm149 = vcmp.lt.f32.partialorder %v148, 0.0004427343
      %v150 = vsel %vm149, %v147, %v144
      %v151 = vadd.f32 %v137, %v150
      %vm152 = vcmp.lt.s32.totalorder %v135, 8
      %v153 = vsel %vm152, %v151, 0.0
      %154 = vadd.xlane.f32.xlu0 %v153
      %v155 = vpop.xlane.xlu0 %154
      %v156 = vrot.slane %v155, 4
      %v157 = vadd.f32 %v155, %v156
      %v158 = vrot.slane %v157, 2
      %v159 = vadd.f32 %v157, %v158
      %v160 = vrot.slane %v159, 1
      %v161 = vadd.f32 %v159, %v160
      %s162 = vtos %v161
      %v163 = vstv %s162
      %v164 = vmul.f32 %v163, 0.125
      %v165 = vld [vmem:[#allocation2] sm:$0xff]
      %v166 = vmax.f32 %v165, 0.0
      %v167 = vmul.f32 %v165, 0.0
      %v168 = vsub.f32 %v166, %v167
      %v169 = vand.u32 2147483647, %v165
      %v170 = vsub.f32 0.0, %v169
      %v171 = vmul.f32 %v170, 1.442695
      %v172 = vpow.pop %v171
      %v173 = vadd.f32 %v172, 1.0
      %v174 = vlog2.pop %v173
      %v175 = vmul.f32 %v174, 0.6931472
      %v176 = vmul.f32 -0.5, %v172
      %v177 = vadd.f32 %v176, 1.0
      %v178 = vmul.f32 %v177, %v172
      %v179 = vand.u32 2147483647, %v172
      %vm180 = vcmp.lt.f32.partialorder %v179, 0.0004427343
      %v181 = vsel %vm180, %v178, %v175
      %v182 = vadd.f32 %v168, %v181
      %v183 = vsel %vm152, %v182, 0.0
      %184 = vadd.xlane.f32.xlu0 %v183
      %v185 = vpop.xlane.xlu0 %184
      %v186 = vrot.slane %v185, 4
      %v187 = vadd.f32 %v185, %v186
      %v188 = vrot.slane %v187, 2
      %v189 = vadd.f32 %v187, %v188
      %v190 = vrot.slane %v189, 1
      %v191 = vadd.f32 %v189, %v190
      %s192 = vtos %v191
      %v193 = vstv %s192
      %v194 = vmul.f32 %v193, 0.125
      %v195 = vadd.f32 %v164, %v194
      %v196 = vld [vmem:[#allocation7] sm:$0xff]
      %v197 = vsel %vm53, %v195, %v196
      %198 = vst [vmem:[#allocation7] sm:$0xff] %v197
    $region33: #{tpu_custom_call.1} parent=1 // pred_fallthru
      _
    // Predicated region
    $region34: #{tpu_custom_call.1} parent=1 // pred_check
      _
    $region35: #{tpu_custom_call.1} parent=1 // pred_check_branch
      %200 = sbr.rel (0) target = $region37
    $region36: #{tpu_custom_call.1} parent=1 // pred_region
      %s202 = ssub.s32 128, 128
      %203 = vsyncadd [#allocation4], %s202
      %s205 = sshll.u32 [#allocation7], 4
      %s206 = int_to_ptr.vmem [resolvable:$true] %s205
      %208 = dma.vmem_to_hbm [thread:$0]  %s206, 128, %s5, [#allocation4]
    $region37: #{tpu_custom_call.1} parent=1 // pred_fallthru
      _
    // Predicated region
    $region38: #{tpu_custom_call.1} parent=1 // pred_check
      _
    $region39: #{tpu_custom_call.1} parent=1 // pred_check_branch
      %210 = sbr.rel (0) target = $region41
    $region40: #{tpu_custom_call.1} parent=1 // pred_region
      %211 = dma.done [#allocation4], 128
    $region41: #{tpu_custom_call.1} parent=1 // pred_fallthru
      _
    %212 = vsyncpa [#allocation3], 1
    %213 = vsyncpa [#allocation6], 1
    %214 = vsyncpa [#allocation4], 1

</llo_original>
